<compile_context>
chip_gen: v7x
topology: tpu7x:2x2x1
jax: 0.10.0
libtpu: 0.0.40
codegen_flags: <defaults>
</compile_context>

<pallas_src>
import math
import functools

import jax
import jax.numpy as jnp
from jax.experimental import pallas as pl
from jax.experimental.pallas import tpu as pltpu


def _sublane_multiple(dtype):
    # Sublane packing tile for the second-minor dim: f32 -> 8, bf16 -> 16, int8/fp8 -> 32.
    return {4: 8, 2: 16, 1: 32}[jnp.dtype(dtype).itemsize]


def _vmem_capacity_bytes():
    # Generation-aware VMEM capacity (128 MiB on v5e/v6e, 64 MiB per TC on v7x).
    # Fall back to the conservative 64 MiB if the query is unavailable.
    try:
        info = pltpu.get_tpu_info()
        cap = getattr(info, "vmem_capacity_bytes", None)
        if cap:
            return int(cap)
    except Exception:
        pass
    return 64 * 1024 * 1024


def _bert_intermediate_kernel(x_ref, w_ref, b_ref, o_ref, *, compute_dtype):
    # x_ref: (tm, H) input dtype; w_ref: (H, I) compute dtype (resident);
    # b_ref: (1, I) (resident); o_ref: (tm, I).
    x = x_ref[...]
    if compute_dtype is not None and x.dtype != compute_dtype:
        # Cast activations in-kernel: avoids a separate wrapper-side HBM pass over x.
        x = x.astype(compute_dtype)
    y = jnp.dot(x, w_ref[...], preferred_element_type=jnp.float32)
    y = y + b_ref[...].astype(jnp.float32)
    # Exact GELU (matches the PyTorch reference): y * 0.5 * (1 + erf(y / sqrt(2))),
    # computed in f32 regardless of matmul operand dtype.
    # TODO(synk): if a bundle dump shows the VALU saturating on v6e/v7x, a bf16 or
    # tanh-approx epilogue (EUP slot) recovers headroom at a small numerics cost.
    inv_sqrt2 = jnp.float32(1.0 / math.sqrt(2.0))
    act = y * 0.5 * (1.0 + jax.lax.erf(y * inv_sqrt2))
    o_ref[...] = act.astype(o_ref.dtype)


@functools.partial(jax.jit, static_argnames=("tm", "compute_dtype"))
def bert_intermediate(hidden_states, weight_t, bias, *, tm=512,
                      compute_dtype=jnp.bfloat16):
    """hidden_states: (B, S, H); weight_t: (H, I) (== PyTorch weight.T); bias: (I,)."""
    B, S, H = hidden_states.shape
    Hw, I = weight_t.shape
    assert Hw == H, "weight_t must be (hidden, intermediate) == PyTorch weight.T"
    out_dtype = hidden_states.dtype

    x = hidden_states.reshape(B * S, H)
    M = x.shape[0]

    # Weights/bias are static per model: cast once (intended to be hoisted out of the
    # per-call path) and present the bias as a lane-vector.
    w = weight_t.astype(compute_dtype) if compute_dtype is not None else weight_t
    bias2d = bias.reshape(1, I)

    # Row tile: full-array block for small M, otherwise a sublane-aligned tile of the
    # stored (x / out) dtype.  A partial final tile is masked by Pallas.
    sub = max(_sublane_multiple(x.dtype), _sublane_multiple(out_dtype))
    if M <= tm:
        tm_eff = M
    else:
        tm_eff = max((tm // sub) * sub, sub)
    grid = (pl.cdiv(M, tm_eff),)

    x_b = jnp.dtype(x.dtype).itemsize
    w_b = jnp.dtype(w.dtype).itemsize
    o_b = jnp.dtype(out_dtype).itemsize
    b_b = jnp.dtype(bias.dtype).itemsize

    # VMEM budget: double-buffered x / out tiles + weight/bias (allocated double-
    # buffered by the pipeline but DMA'd only once since their block index is constant).
    vmem_est = (2 * (tm_eff * H * x_b + tm_eff * I * o_b)
                + 2 * (H * I * w_b + I * b_b))
    cap = max(_vmem_capacity_bytes() - 8 * 1024 * 1024, 32 * 1024 * 1024)
    vmem_limit = int(min(max(int(1.5 * vmem_est), 32 * 1024 * 1024), cap))

    cost = pl.CostEstimate(
        flops=2 * M * H * I,
        transcendentals=M * I,                          # erf epilogue
        bytes_accessed=(M * H * x_b + H * I * w_b       # weight read exactly once
                        + I * b_b + M * I * o_b),
    )

    kernel = functools.partial(_bert_intermediate_kernel, compute_dtype=compute_dtype)

    out = pl.pallas_call(
        kernel,
        out_shape=jax.ShapeDtypeStruct((M, I), out_dtype),
        grid_spec=pltpu.PrefetchScalarGridSpec(
            num_scalar_prefetch=0,
            grid=grid,
            in_specs=[
                pl.BlockSpec((tm_eff, H), lambda i: (i, 0)),  # streaming token-row tile
                pl.BlockSpec((H, I), lambda i: (0, 0)),       # resident full weight
                pl.BlockSpec((1, I), lambda i: (0, 0)),       # resident bias
            ],
            out_specs=pl.BlockSpec((tm_eff, I), lambda i: (i, 0)),
        ),
        compiler_params=pltpu.CompilerParams(
            dimension_semantics=("parallel",),  # token tiles split across TCs (megacore/v7x)
            vmem_limit_bytes=vmem_limit,
        ),
        cost_estimate=cost,
    )(x, w, bias2d)

    return out.reshape(B, S, I)


def _reference(hidden_states, weight_t, bias):
    y = jnp.einsum("bsh,hi->bsi", hidden_states, weight_t) + bias
    return y * 0.5 * (1.0 + jax.lax.erf(y / jnp.float32(math.sqrt(2.0))))


if __name__ == "__main__":
    # BERT-style config at small shapes: hidden_size=32, intermediate_size=128, gelu.
    batch, seq, hidden, intermediate = 2, 8, 32, 128

    key = jax.random.PRNGKey(0)
    kx, kw, kb = jax.random.split(key, 3)

    hidden_states = jax.random.normal(kx, (batch, seq, hidden), dtype=jnp.float32)
    # nn.Linear(hidden, intermediate): weight (intermediate, hidden), bias (intermediate,)
    # -> the kernel takes the transposed weight (hidden, intermediate).
    weight_t = (jax.random.normal(kw, (hidden, intermediate), dtype=jnp.float32)
                * (1.0 / math.sqrt(hidden)))
    bias = jax.random.normal(kb, (intermediate,), dtype=jnp.float32) * 0.02

    ref = _reference(hidden_states, weight_t, bias)

    # 1) Exact f32 operand path (matches the PyTorch module's numerics).
    out_f32 = jax.block_until_ready(
        bert_intermediate(hidden_states, weight_t, bias, compute_dtype=jnp.float32))
    assert out_f32.shape == (batch, seq, intermediate)
    assert jnp.allclose(out_f32, ref, atol=1e-5, rtol=1e-5), "f32 path mismatch"

    # 2) Default bf16-operand path (f32 accumulation + f32 GELU epilogue).
    out_bf16 = jax.block_until_ready(bert_intermediate(hidden_states, weight_t, bias))
    assert out_bf16.shape == (batch, seq, intermediate)
    assert jnp.allclose(out_bf16, ref, atol=2e-2, rtol=2e-2), "bf16 path mismatch"

    # 3) Ragged token count and non-128-multiple intermediate width (full-dim blocks,
    #    no wrapper padding or output slicing).
    hs_r = hidden_states[:, :7, :]          # 14 tokens
    w_r = weight_t[:, :100]                 # I = 100
    b_r = bias[:100]
    out_r = jax.block_until_ready(
        bert_intermediate(hs_r, w_r, b_r, compute_dtype=jnp.float32))
    ref_r = _reference(hs_r, w_r, b_r)
    assert out_r.shape == (batch, 7, 100)
    assert jnp.allclose(out_r, ref_r, atol=1e-5, rtol=1e-5), "ragged path mismatch"

    # 4) Partial last row-tile (masked final block): tm smaller than and non-divisible into M.
    hs_p = hidden_states[:, :5, :]          # 10 tokens, tm=8 -> grid=2, last tile masked
    out_p = jax.block_until_ready(
        bert_intermediate(hs_p, weight_t, bias, tm=8, compute_dtype=jnp.float32))
    ref_p = _reference(hs_p, weight_t, bias)
    assert out_p.shape == (batch, 5, intermediate)
    assert jnp.allclose(out_p, ref_p, atol=1e-5, rtol=1e-5), "partial-tile path mismatch"

    print("KERNEL_OK")
</pallas_src>

<mosaic_0001>
module attributes {stable_mosaic.version = 11 : i64} {
  func.func @_bert_intermediate_kernel(%arg0: i32, %arg1: memref<16x32xf32, #tpu.memory_space<vmem>>, %arg2: memref<32x128xf32, #tpu.memory_space<vmem>>, %arg3: memref<1x128xf32, #tpu.memory_space<vmem>>, %arg4: memref<16x128xf32, #tpu.memory_space<vmem>>) attributes {dimension_semantics = [#tpu.dimension_semantics<parallel>], iteration_bounds = array<i64: 1>, scalar_prefetch = 0 : i64, scratch_operands = 0 : i64, tpu.core_type = #tpu.core_type<tc>, window_params = [{transform_indices = @transform_0, window_bounds = array<i64: 16, 32>}, {pipeline_mode = #tpu.pipeline_mode<synchronous>, transform_indices = @transform_1, window_bounds = array<i64: 32, 128>}, {pipeline_mode = #tpu.pipeline_mode<synchronous>, transform_indices = @transform_2, window_bounds = array<i64: 1, 128>}, {transform_indices = @transform_3, window_bounds = array<i64: 16, 128>}]} {
    %c0 = arith.constant 0 : index
    %c0_0 = arith.constant 0 : index
    %0 = vector.load %arg1[%c0, %c0_0] : memref<16x32xf32, #tpu.memory_space<vmem>>, vector<16x32xf32>
    %c0_1 = arith.constant 0 : index
    %c0_2 = arith.constant 0 : index
    %1 = vector.load %arg2[%c0_1, %c0_2] : memref<32x128xf32, #tpu.memory_space<vmem>>, vector<32x128xf32>
    %cst = arith.constant dense<0.000000e+00> : vector<16x128xf32>
    %2 = tpu.matmul %0, %1, %cst {dimension_numbers = #tpu.dot_dimension_numbers<[1], [0], [0], [1], [0, 0, 1, 1], [], []>} : vector<16x32xf32>, vector<32x128xf32>, vector<16x128xf32> -> vector<16x128xf32>
    %c0_3 = arith.constant 0 : index
    %c0_4 = arith.constant 0 : index
    %3 = vector.load %arg3[%c0_3, %c0_4] : memref<1x128xf32, #tpu.memory_space<vmem>>, vector<1x128xf32>
    %4 = vector.broadcast %3 : vector<1x128xf32> to vector<16x128xf32>
    %5 = arith.addf %2, %4 : vector<16x128xf32>
    %cst_5 = arith.constant 5.000000e-01 : f32
    %6 = vector.broadcast %cst_5 : f32 to vector<16x128xf32>
    %7 = arith.mulf %5, %6 : vector<16x128xf32>
    %cst_6 = arith.constant 0.707106769 : f32
    %8 = vector.broadcast %cst_6 : f32 to vector<16x128xf32>
    %9 = arith.mulf %5, %8 : vector<16x128xf32>
    %10 = math.erf %9 : vector<16x128xf32>
    %cst_7 = arith.constant 1.000000e+00 : f32
    %11 = vector.broadcast %cst_7 : f32 to vector<16x128xf32>
    %12 = arith.addf %11, %10 : vector<16x128xf32>
    %13 = arith.mulf %7, %12 : vector<16x128xf32>
    %c0_8 = arith.constant 0 : index
    %c0_9 = arith.constant 0 : index
    %14 = vector.load %arg4[%c0_8, %c0_9] : memref<16x128xf32, #tpu.memory_space<vmem>>, vector<16x128xf32>
    tpu.vector_store %arg4[%c0_8, %c0_9], %13 {strides = array<i32>} : memref<16x128xf32, #tpu.memory_space<vmem>>, vector<16x128xf32>,
    return
  }
  func.func @transform_0(%arg0: i32) -> (i32, i32) {
    %c0_i32 = arith.constant 0 : i32
    %c0_i32_0 = arith.constant 0 : i32
    return %arg0, %c0_i32 : i32, i32
  }
  func.func @transform_1(%arg0: i32) -> (i32, i32) {
    %c0_i32 = arith.constant 0 : i32
    %c0_i32_0 = arith.constant 0 : i32
    %c0_i32_1 = arith.constant 0 : i32
    return %c0_i32, %c0_i32_0 : i32, i32
  }
  func.func @transform_2(%arg0: i32) -> (i32, i32) {
    %c0_i32 = arith.constant 0 : i32
    %c0_i32_0 = arith.constant 0 : i32
    %c0_i32_1 = arith.constant 0 : i32
    return %c0_i32, %c0_i32_0 : i32, i32
  }
  func.func @transform_3(%arg0: i32) -> (i32, i32) {
    %c0_i32 = arith.constant 0 : i32
    %c0_i32_0 = arith.constant 0 : i32
    return %arg0, %c0_i32 : i32, i32
  }
}

</mosaic_0001>

<llo_original>
// kernel: bert_intermediate.1
$region0: #{bert_intermediate.1}
  #allocation0 [shape = 'u32[]', space=smem, size = 0x4, offset = 0x4, fixed_abs, tag = 'smem constant byte address 0x4 - core index']
  #allocation1 [shape = 'u32[144,128]{1,0:T(1,128)}', space=vmem, size = 0x12000, scoped, tag = 'internal scratch']
  %s0 = inlined_call_operand.hbm [shape: f32[16,32], index: 0, kind: input, shape index: {}]
  %s1 = inlined_call_operand.hbm [shape: f32[32,128], index: 1, kind: input, shape index: {}]
  %s2 = inlined_call_operand.vmem [shape: f32[1,128], index: 2, kind: input, shape index: {}]
  %s3 = inlined_call_operand.hbm [shape: f32[16,128], index: 3, kind: output, shape index: {}]
  %s4 = sld [smem:[#allocation0]]
  $region30: #{bert_intermediate.1} parent=0
    _
  %s6 = ssub.s32 1, %s4
  %s7 = scalar_select 0, %s6, %s4
  $region1: #{bert_intermediate.1} parent=0
    #allocation2 [shape = 'u8[8192]{0}', space=vmem, size = 0x2000, scoped, tag = 'input window, operand 0, single buffered']
    #allocation3 [shape = 's32[1]{0}', space=sflag, size = 0x4, scoped, tag = 'scoped memory for bert_intermediate.1']
    #allocation4 [shape = 's32[1]{0}', space=sflag, size = 0x4, scoped, tag = 'scoped memory for bert_intermediate.1']
    #allocation5 [shape = 'u8[16384]{0}', space=vmem, size = 0x4000, scoped, tag = 'input window, operand 1, single buffered']
    #allocation6 [shape = 's32[1]{0}', space=sflag, size = 0x4, scoped, tag = 'scoped memory for bert_intermediate.1']
    #allocation7 [shape = 'u8[8192]{0}', space=vmem, size = 0x2000, scoped, tag = 'output window, operand 0, single buffered']
    %8 = vsyncpa [#allocation3], 0
    %9 = vsyncpa [#allocation6], 0
    %10 = vsyncpa [#allocation4], 0
    // Predicated region
    $region2: #{bert_intermediate.1} parent=1 // pred_check
      _
    $region3: #{bert_intermediate.1} parent=1 // pred_check_branch
      %12 = sbr.rel (0) target = $region5
    $region4: #{bert_intermediate.1} parent=1 // pred_region
      %s14 = ssub.s32 256, 256
      %15 = vsyncadd [#allocation3], %s14
      %s16 = sshll.u32 [#allocation2], 4
      %s17 = int_to_ptr.vmem [resolvable:$true] %s16
      %22 = dma.hbm_to_vmem [thread:$0]  %s0, 256, %s17, [#allocation3], 128, 128, 8
    $region5: #{bert_intermediate.1} parent=1 // pred_fallthru
      _
    // Predicated region
    $region6: #{bert_intermediate.1} parent=1 // pred_check
      _
    $region7: #{bert_intermediate.1} parent=1 // pred_check_branch
      %24 = sbr.rel (0) target = $region9
    $region8: #{bert_intermediate.1} parent=1 // pred_region
      %s26 = ssub.s32 512, 512
      %27 = vsyncadd [#allocation6], %s26
      %s28 = sshll.u32 [#allocation5], 4
      %s29 = int_to_ptr.vmem [resolvable:$true] %s28
      %34 = dma.hbm_to_vmem [thread:$0]  %s1, 512, %s29, [#allocation6], 128, 128, 8
    $region9: #{bert_intermediate.1} parent=1 // pred_fallthru
      _
    // Predicated region
    $region10: #{bert_intermediate.1} parent=1 // pred_check
      _
    $region11: #{bert_intermediate.1} parent=1 // pred_check_branch
      %36 = sbr.rel (0) target = $region13
    $region12: #{bert_intermediate.1} parent=1 // pred_region
      _
    $region13: #{bert_intermediate.1} parent=1 // pred_fallthru
      _
    // Predicated region
    $region14: #{bert_intermediate.1} parent=1 // pred_check
      _
    $region15: #{bert_intermediate.1} parent=1 // pred_check_branch
      %38 = sbr.rel (0) target = $region17
    $region16: #{bert_intermediate.1} parent=1 // pred_region
      %39 = dma.done [#allocation3], 256
    $region17: #{bert_intermediate.1} parent=1 // pred_fallthru
      _
    // Predicated region
    $region18: #{bert_intermediate.1} parent=1 // pred_check
      _
    $region19: #{bert_intermediate.1} parent=1 // pred_check_branch
      %41 = sbr.rel (0) target = $region21
    $region20: #{bert_intermediate.1} parent=1 // pred_region
      %42 = dma.done [#allocation6], 512
    $region21: #{bert_intermediate.1} parent=1 // pred_fallthru
      _
    %v43 = vld [vmem:[#allocation2] sm:$0xff]
    %v44 = vld [vmem:[#allocation2 + $0x8] sm:$0xff]
    %v45 = vld [vmem:[#allocation5] sm:$0xff]
    %v46 = vld [vmem:[#allocation5 + $0x8] sm:$0xff]
    %v47 = vld [vmem:[#allocation5 + $0x10] sm:$0xff]
    %v48 = vld [vmem:[#allocation5 + $0x18] sm:$0xff]
    %v49 = vld [vmem:[%s2] sm:$0x1]
    %v51 = vlaneseq
    %v52 = vshrl.u32 %v51, 7
    %v53 = vsub.s32 0, %v52
    %v54 = vrot.slane %v49, %v53
    %vm56 = vcmask 261120
    %v58 = vsel %vm56, %v43, 0
    %v61 = vsel %vm56, %v44, 0
    %63 = vmatprep.subr.mxu0 0.0
    %64 = vmatpush1.msra.mxu0 %v45
    %65 = vmatprep.subr.mxu0 0.0
    %66 = vmatpush1.msra.mxu0 %v46
    %67 = vmatprep.subr.mxu0 0.0
    %68 = vmatpush1.msra.mxu0 %v47
    %69 = vmatprep.subr.mxu0 0.0
    %70 = vmatpush1.msra.mxu0 %v48
    %71 = vmatprep.subr.mxu0 0.0
    %72 = vmatpush1.msra.mxu0 0.0
    %73 = vmatprep.subr.mxu0 0.0
    %74 = vmatpush1.msra.mxu0 0.0
    %75 = vmatprep.subr.mxu0 0.0
    %76 = vmatpush1.msra.mxu0 0.0
    %77 = vmatprep.subr.mxu0 0.0
    %78 = vmatpush1.msra.mxu0 0.0
    %79 = vmatprep.subr.mxu0 0.0
    %80 = vmatpush1.msra.mxu0 0.0
    %81 = vmatprep.subr.mxu0 0.0
    %82 = vmatpush1.msra.mxu0 0.0
    %83 = vmatprep.subr.mxu0 0.0
    %84 = vmatpush1.msra.mxu0 0.0
    %85 = vmatprep.subr.mxu0 0.0
    %86 = vmatpush1.msra.mxu0 0.0
    %87 = vmatprep.subr.mxu0 0.0
    %88 = vmatpush1.msra.mxu0 0.0
    %89 = vmatprep.subr.mxu0 0.0
    %90 = vmatpush1.msra.mxu0 0.0
    %91 = vmatprep.subr.mxu0 0.0
    %92 = vmatpush1.msra.mxu0 0.0
    %93 = vmatprep.subr.mxu0 0.0
    %94 = vmatpush1.msra.mxu0 0.0
    %95 = vmatprep.subr.mxu0 0.0
    %96 = vmatpush1.msra.mxu0 0.0
    %97 = vmatprep.subr.mxu0 0.0
    %98 = vmatpush1.msra.mxu0 0.0
    %99 = vmatprep.subr.mxu0 0.0
    %100 = vmatpush1.msra.mxu0 0.0
    %101 = vmatprep.subr.mxu0 0.0
    %102 = vmatpush1.msra.mxu0 0.0
    %103 = vmatprep.subr.mxu0 0.0
    %104 = vmatpush1.msra.mxu0 0.0
    %105 = vmatprep.subr.mxu0 0.0
    %106 = vmatpush1.msra.mxu0 0.0
    %107 = vmatprep.subr.mxu0 0.0
    %108 = vmatpush1.msra.mxu0 0.0
    %109 = vmatprep.subr.mxu0 0.0
    %110 = vmatpush1.msra.mxu0 0.0
    %111 = vmatprep.subr.mxu0 0.0
    %112 = vmatpush1.msra.mxu0 0.0
    %113 = vmatprep.subr.mxu0 0.0
    %114 = vmatpush1.msra.mxu0 0.0
    %115 = vmatprep.subr.mxu0 0.0
    %116 = vmatpush1.msra.mxu0 0.0
    %117 = vmatprep.subr.mxu0 0.0
    %118 = vmatpush1.msra.mxu0 0.0
    %119 = vmatprep.subr.mxu0 0.0
    %120 = vmatpush1.msra.mxu0 0.0
    %121 = vmatprep.subr.mxu0 0.0
    %122 = vmatpush1.msra.mxu0 0.0
    %123 = vmatprep.subr.mxu0 0.0
    %124 = vmatpush1.msra.mxu0 0.0
    %125 = vmatprep.subr.mxu0 0.0
    %126 = vmatpush1.msra.mxu0 0.0
    %127 = vmatprep.mubr.f32.mxu0 0.0
    %128 = vmatmul.mubr.f32.gmra.mrb[0].mxu0 %v58
    %v129 = vpop.f32.mrb[0].mxu0
    %v130 = vadd.f32 %v54, %v129
    %v131 = vpop.f32.mrb[0].mxu0
    %132 = vmatprep.mubr.f32.mxu0 0.0
    %133 = vmatmul.mubr.f32.gmra.mrb[0].mxu0 %v61
    %v134 = vpop.f32.mrb[0].mxu0
    %v135 = vadd.f32 %v54, %v134
    %v136 = vpop.f32.mrb[0].mxu0
    %137 = vdwg.mxu0
    %v138 = vmul.f32 %v130, 0.5
    %v139 = vmul.f32 %v135, 0.5
    %v140 = vmul.f32 %v130, 0.70710677
    %v141 = vmul.f32 %v135, 0.70710677
    %v142 = verf.f32.pop %v140
    %v143 = verf.f32.pop %v141
    %v144 = vadd.f32 %v142, 1.0
    %v145 = vadd.f32 %v143, 1.0
    %v146 = vmul.f32 %v138, %v144
    %v147 = vmul.f32 %v139, %v145
    %148 = vst [vmem:[#allocation7] sm:$0xff] %v146
    %149 = vst [vmem:[#allocation7 + $0x8] sm:$0xff] %v147
    // Predicated region
    $region22: #{bert_intermediate.1} parent=1 // pred_check
      _
    $region23: #{bert_intermediate.1} parent=1 // pred_check_branch
      %151 = sbr.rel (0) target = $region25
    $region24: #{bert_intermediate.1} parent=1 // pred_region
      %s153 = ssub.s32 256, 256
      %154 = vsyncadd [#allocation4], %s153
      %s155 = sshll.u32 [#allocation7], 4
      %s156 = int_to_ptr.vmem [resolvable:$true] %s155
      %161 = dma.vmem_to_hbm [thread:$0]  %s156, 256, %s3, [#allocation4], 128, 128, 8
    $region25: #{bert_intermediate.1} parent=1 // pred_fallthru
      _
    // Predicated region
    $region26: #{bert_intermediate.1} parent=1 // pred_check
      _
    $region27: #{bert_intermediate.1} parent=1 // pred_check_branch
      %163 = sbr.rel (0) target = $region29
    $region28: #{bert_intermediate.1} parent=1 // pred_region
      %164 = dma.done [#allocation4], 256
    $region29: #{bert_intermediate.1} parent=1 // pred_fallthru
      _
    %165 = vsyncpa [#allocation3], 1
    %166 = vsyncpa [#allocation6], 1
    %167 = vsyncpa [#allocation4], 1

</llo_original>
